<compile_context>
chip_gen: v6e
topology: v6e:2x2x1
jax: 0.10.0
libtpu: 0.0.40
codegen_flags: <defaults>
</compile_context>

<pallas_src>
import functools

import numpy as np
import jax
import jax.numpy as jnp
from jax.experimental import pallas as pl
from jax.experimental.pallas import tpu as pltpu

BN_EPS = 1e-5
SIZES = (1, 2, 3, 6)
VMEM_LIMIT = 32 * 1024 * 1024  # safe on v5e/v6e (128 MiB) and v7x (64 MiB physical)


def _round_up(x, m):
    return (x + m - 1) // m * m


def _apply_act(y, act, alpha):
    if act == "relu":
        return jnp.maximum(y, 0.0)
    if act == "prelu":
        return jnp.where(y > 0, y, alpha * y)
    if act == "sigmoid":
        return jax.nn.sigmoid(y)
    return y


# ----------------------------------------------------------------------------
# Generic fused matmul kernel: out = act((A @ B) * scale + bias)
# ----------------------------------------------------------------------------
def _mm_kernel(a_ref, b_ref, s_ref, b2_ref, o_ref, *, act, alpha):
    y = jnp.dot(a_ref[...], b_ref[...], preferred_element_type=jnp.float32)
    y = y * s_ref[...] + b2_ref[...]
    o_ref[...] = _apply_act(y, act, alpha)


def matmul_bias_act(a, b, scale=None, bias=None, act=None, alpha=0.25):
    """act((a @ b) * scale + bias); scale/bias broadcast per output column."""
    a = jnp.asarray(a)
    b = jnp.asarray(b)
    M, K = a.shape
    K2, N = b.shape
    assert K == K2
    s = jnp.ones((N,), jnp.float32) if scale is None else jnp.asarray(scale, jnp.float32)
    bi = jnp.zeros((N,), jnp.float32) if bias is None else jnp.asarray(bias, jnp.float32)

    # Tiny matmuls (MLP heads, pooled-stage convs, coef layers, N=3 final conv)
    # are pure launch/pad overhead on the MXU -> let XLA fuse them.
    if M < 128 or K * N < 4096:
        y = jnp.dot(a.astype(jnp.float32), b.astype(jnp.float32)) * s + bi
        return _apply_act(y, act, alpha)

    # Pallas path: bf16 operands on the MXU, fp32 accumulation + fused epilogue.
    a16 = a.astype(jnp.bfloat16)
    b16 = b.astype(jnp.bfloat16)
    if M <= 512:
        tm, Mp = M, M                       # single full block, no padding
    else:
        tm = 512
        Mp = _round_up(M, tm)
        if Mp != M:
            a16 = jnp.pad(a16, ((0, Mp - M), (0, 0)))
    # K collapsed into a single block (K <= ~600 everywhere in this network);
    # N kept as one lane-dense block when small, else tiled at 128.
    tn = N if N <= 512 else 128
    Np = _round_up(N, tn)
    if Np != N:
        b16 = jnp.pad(b16, ((0, 0), (0, Np - N)))
        s = jnp.pad(s, (0, Np - N))
        bi = jnp.pad(bi, (0, Np - N))

    kernel = functools.partial(_mm_kernel, act=act, alpha=alpha)
    out = pl.pallas_call(
        kernel,
        out_shape=jax.ShapeDtypeStruct((Mp, Np), jnp.float32),
        grid_spec=pltpu.PrefetchScalarGridSpec(
            num_scalar_prefetch=0,
            grid=(Mp // tm, Np // tn),
            in_specs=[
                pl.BlockSpec((tm, K), lambda i, j: (i, 0)),
                pl.BlockSpec((K, tn), lambda i, j: (0, j)),
                pl.BlockSpec((1, tn), lambda i, j: (0, j)),
                pl.BlockSpec((1, tn), lambda i, j: (0, j)),
            ],
            out_specs=pl.BlockSpec((tm, tn), lambda i, j: (i, j)),
        ),
        compiler_params=pltpu.CompilerParams(
            dimension_semantics=("parallel", "parallel"),
            vmem_limit_bytes=VMEM_LIMIT),
    )(a16, b16, s.reshape(1, Np), bi.reshape(1, Np))
    if Mp != M or Np != N:
        out = out[:M, :N]
    return out


# ----------------------------------------------------------------------------
# Fused 3x3 conv (stride 1, pad 1, NHWC) + BN scale/bias + activation
# ----------------------------------------------------------------------------
def _conv3x3_kernel(x_ref, w_ref, ml_ref, mr_ref, s_ref, b_ref, o_ref,
                    *, W, act, alpha):
    # x_ref : ((H+2)*W + 2, Cin) fp32  -- H-padded, pixel-flattened image
    # w_ref : (9, Cin, Cout) bf16      -- tap order kh*3 + kw
    # ml/mr : (H*W, 1) masks zeroing the row-wraparound columns (w==0 / w==W-1)
    hw, cout = o_ref.shape
    acc = jnp.zeros((hw, cout), jnp.float32)
    for dh in range(3):
        for dw in range(3):
            off = dh * W + dw
            a = x_ref[off:off + hw, :]
            if dw == 0:
                a = a * ml_ref[...]
            elif dw == 2:
                a = a * mr_ref[...]
            acc = acc + jnp.dot(a.astype(jnp.bfloat16), w_ref[dh * 3 + dw],
                                preferred_element_type=jnp.float32)
    y = acc * s_ref[...] + b_ref[...]
    o_ref[...] = _apply_act(y, act, alpha)


def conv3x3_p1(x, w, scale=None, bias=None, act=None, alpha=0.25):
    """x: (N, H, W, Cin) NHWC; w: (Cout, Cin, 3, 3). One fused kernel per image."""
    N, H, W, Cin = x.shape
    Cout = w.shape[0]
    HW = H * W
    # Zero-pad H by one row top/bottom, flatten pixels, add one zero pixel
    # front/back so every (dh, dw) tap is a contiguous row slice of the ref.
    xp = jnp.pad(x.astype(jnp.float32), ((0, 0), (1, 1), (0, 0), (0, 0)))
    flat = jnp.pad(xp.reshape(N, (H + 2) * W, Cin), ((0, 0), (1, 1), (0, 0)))
    R = (H + 2) * W + 2
    wm = jnp.transpose(w, (2, 3, 1, 0)).reshape(9, Cin, Cout).astype(jnp.bfloat16)
    # Width-edge masks: the flattened shift wraps across rows at w==0 / w==W-1.
    wpos = jnp.arange(HW, dtype=jnp.int32) % W
    ml = (wpos != 0).astype(jnp.float32).reshape(HW, 1)
    mr = (wpos != W - 1).astype(jnp.float32).reshape(HW, 1)
    s = jnp.ones((Cout,), jnp.float32) if scale is None else jnp.asarray(scale, jnp.float32)
    bi = jnp.zeros((Cout,), jnp.float32) if bias is None else jnp.asarray(bias, jnp.float32)

    kernel = functools.partial(_conv3x3_kernel, W=W, act=act, alpha=alpha)
    out = pl.pallas_call(
        kernel,
        out_shape=jax.ShapeDtypeStruct((N, HW, Cout), jnp.float32),
        grid_spec=pltpu.PrefetchScalarGridSpec(
            num_scalar_prefetch=0,
            grid=(N,),
            in_specs=[
                pl.BlockSpec((None, R, Cin), lambda n: (n, 0, 0)),
                pl.BlockSpec((9, Cin, Cout), lambda n: (0, 0, 0)),
                pl.BlockSpec((HW, 1), lambda n: (0, 0)),
                pl.BlockSpec((HW, 1), lambda n: (0, 0)),
                pl.BlockSpec((1, Cout), lambda n: (0, 0)),
                pl.BlockSpec((1, Cout), lambda n: (0, 0)),
            ],
            out_specs=pl.BlockSpec((None, HW, Cout), lambda n: (n, 0, 0)),
        ),
        compiler_params=pltpu.CompilerParams(
            dimension_semantics=("parallel",),
            vmem_limit_bytes=VMEM_LIMIT),
    )(flat, wm, ml, mr, s.reshape(1, Cout), bi.reshape(1, Cout))
    # TODO(synk): at full-scale channel counts, tile HW/Cout with halo'd manual DMA
    #             instead of whole-image blocks (v7x VMEM budget = 64 MiB).
    return out.reshape(N, H, W, Cout)


# ----------------------------------------------------------------------------
# Batched self-attention kernel (softmax fused, grid over batch)
# ----------------------------------------------------------------------------
def _selfatt_kernel(q_ref, kt_ref, v_ref, o_ref):
    # q: (HW, C8), kt: (C8, HW), v: (HW, C)  -- channels-last, per image
    e = jnp.dot(q_ref[...], kt_ref[...], preferred_element_type=jnp.float32)
    e = e - jnp.max(e, axis=-1, keepdims=True)
    p = jnp.exp(e)
    p = p / jnp.sum(p, axis=-1, keepdims=True)
    o_ref[...] = jnp.dot(p.astype(v_ref.dtype), v_ref[...],
                         preferred_element_type=jnp.float32)


def self_att(x, p):
    # TODO(synk): `SelfAttLayer` source not provided -> SAGAN-style stand-in.
    N, H, W, C = x.shape
    HW = H * W
    xm = x.reshape(N, HW, C)
    x2 = xm.reshape(N * HW, C)
    c8 = p["wq"].shape[0]
    q = matmul_bias_act(x2, p["wq"].T, bias=p["bq"]).reshape(N, HW, c8)
    k = matmul_bias_act(x2, p["wk"].T, bias=p["bk"]).reshape(N, HW, c8)
    v = matmul_bias_act(x2, p["wv"].T, bias=p["bv"]).reshape(N, HW, C)
    att = pl.pallas_call(
        _selfatt_kernel,
        out_shape=jax.ShapeDtypeStruct((N, HW, C), jnp.float32),
        grid_spec=pltpu.PrefetchScalarGridSpec(
            num_scalar_prefetch=0,
            grid=(N,),
            in_specs=[
                pl.BlockSpec((None, HW, c8), lambda n: (n, 0, 0)),
                pl.BlockSpec((None, c8, HW), lambda n: (n, 0, 0)),
                pl.BlockSpec((None, HW, C), lambda n: (n, 0, 0)),
            ],
            out_specs=pl.BlockSpec((None, HW, C), lambda n: (n, 0, 0)),
        ),
        compiler_params=pltpu.CompilerParams(
            dimension_semantics=("parallel",),
            vmem_limit_bytes=VMEM_LIMIT),
    )(q.astype(jnp.bfloat16),
      jnp.swapaxes(k, 1, 2).astype(jnp.bfloat16),
      v.astype(jnp.bfloat16))
    # TODO(synk): at full scale (HW ~ 10^4) this needs flash-style tiling of the
    #             HWxHW energy instead of a whole-image block.
    return (p["gamma"] * att + xm).reshape(N, H, W, C)


# ----------------------------------------------------------------------------
# Global max pool (adaptive_max_pool2d to (1,1))
# ----------------------------------------------------------------------------
def _gmax_kernel(x_ref, o_ref):
    o_ref[...] = jnp.max(x_ref[...], axis=1)


def global_max_pool(x):
    # x NHWC: (N, H, W, C) -> (N, C)
    N, H, W, C = x.shape
    x3 = x.reshape(N, H * W, C).astype(jnp.float32)
    # TODO(synk): at full-scale channel counts tile the channel axis; whole-array
    #             block is fine at these sizes.
    return pl.pallas_call(
        _gmax_kernel,
        out_shape=jax.ShapeDtypeStruct((N, C), jnp.float32),
    )(x3)


# ----------------------------------------------------------------------------
# Small helpers (XLA: tiny ops are not routed through pallas_call)
# ----------------------------------------------------------------------------
def conv1x1(x, w, bias=None, scale=None, act=None, alpha=0.25):
    # x: (N, H, W, C) NHWC; w: (Cout, Cin)
    N, H, W, C = x.shape
    y = matmul_bias_act(x.reshape(N * H * W, C), jnp.transpose(w),
                        scale=scale, bias=bias, act=act, alpha=alpha)
    return y.reshape(N, H, W, w.shape[0])


def linear(x, w, b, act=None):
    return matmul_bias_act(x, jnp.transpose(w), bias=b, act=act)


def mlp(x, layers):
    n = len(layers)
    for idx, (w, b) in enumerate(layers):
        x = linear(x, w, b, act="relu" if idx < n - 1 else None)
    return x


def apply_hw(x, Ah, Aw):
    # Separable (H, W) linear map on NHWC, tiny matrices -> plain XLA einsum.
    return jnp.einsum('ih,jw,nhwc->nijc',
                      jnp.asarray(Ah, jnp.float32), jnp.asarray(Aw, jnp.float32), x)


def bilinear_matrix(out_size, in_size):
    # F.upsample(mode='bilinear') == interpolate(align_corners=False).
    # TODO(synk): pre-0.4 PyTorch defaulted to align_corners=True; verify vs. ref.
    A = np.zeros((out_size, in_size), np.float32)
    if in_size == 1:
        A[:, 0] = 1.0
        return A
    scale = in_size / out_size
    for i in range(out_size):
        src = (i + 0.5) * scale - 0.5
        src = min(max(src, 0.0), in_size - 1)
        i0 = int(np.floor(src))
        i1 = min(i0 + 1, in_size - 1)
        w1 = src - i0
        A[i, i0] += 1.0 - w1
        A[i, i1] += w1
    return A


def adaptive_avg_matrix(out_size, in_size):
    A = np.zeros((out_size, in_size), np.float32)
    for i in range(out_size):
        start = (i * in_size) // out_size
        end = -(-((i + 1) * in_size) // out_size)
        A[i, start:end] = 1.0 / (end - start)
    return A


# ----------------------------------------------------------------------------
# Modules (NHWC)
# ----------------------------------------------------------------------------
def psp_module(f, p):
    N, H, W, C = f.shape
    priors = []
    for size, w_stage in zip(SIZES, p["stage_ws"]):
        pooled = apply_hw(f, adaptive_avg_matrix(size, H), adaptive_avg_matrix(size, W))
        conv = conv1x1(pooled, w_stage)                       # bias=False
        up = apply_hw(conv, bilinear_matrix(H, size), bilinear_matrix(W, size))
        priors.append(up)
    priors.append(f)
    cat = jnp.concatenate(priors, axis=-1)
    return conv1x1(cat, p["bottle_w"], bias=p["bottle_b"], act="relu")


def psp_upsample(x, p):
    N, H, W, C = x.shape
    up = apply_hw(x, bilinear_matrix(2 * H, H), bilinear_matrix(2 * W, W))
    # Conv3x3 -> BatchNorm (eval, folded into scale/bias) -> PReLU, fully fused.
    s = p["bn_gamma"] / jnp.sqrt(p["bn_var"] + BN_EPS)
    bias = (p["b"] - p["bn_mean"]) * s + p["bn_beta"]
    return conv3x3_p1(up, p["w"], scale=s, bias=bias, act="prelu",
                      alpha=p["prelu_alpha"])


def pspnet_forward(f, class_f, params):
    # Backbone (`extractors.resnet34`) not available -> its outputs are inputs.
    # Channels-last internally; only the returned seg_map is NCHW (PyTorch layout).
    f = jnp.transpose(f, (0, 2, 3, 1))
    class_f = jnp.transpose(class_f, (0, 2, 3, 1))

    p = psp_module(f, params["psp"])
    # drop_1 / drop_2: Dropout2d == identity in inference mode.
    p = psp_upsample(p, params["up1"])
    p = psp_upsample(p, params["up2"])
    p = psp_upsample(p, params["up3"])

    f_att = self_att(f, params["att1"])
    cf_att = self_att(class_f, params["att2"])

    auxiliary = global_max_pool(cf_att)                       # (N, Ccf)
    # Final 1x1 conv has only 3 output channels -> dispatched to XLA by
    # matmul_bias_act (a 128-wide padded MXU tile would be >40x waste);
    # log_softmax runs over the contiguous channel-last axis.
    seg_logits = conv1x1(p, params["final"]["w"], bias=params["final"]["b"])
    seg_nhwc = jax.nn.log_softmax(seg_logits, axis=-1)
    seg_map = jnp.transpose(seg_nhwc, (0, 3, 1, 2))           # NCHW output

    temp1 = global_max_pool(f_att)                            # (N, Cf)
    all_feat = jnp.concatenate((auxiliary, temp1), axis=1)

    classifier = mlp(auxiliary, params["classifier"])

    count_temp = jnp.argmax(seg_nhwc, axis=-1)                # (N, H, W)
    c1 = jnp.sum(count_temp == 1, axis=(-1, -2)).reshape(-1, 1)
    c2 = jnp.sum(count_temp == 2, axis=(-1, -2)).reshape(-1, 1)
    const = seg_map.shape[-1] ** 2   # matches PyTorch (assumes H == W)
    c2p = c2.astype(jnp.float32) / const
    c1p = c1.astype(jnp.float32) / const
    c_all = mlp(jnp.concatenate((c2p, c1p), axis=1), params["classifier3"])

    feature = mlp(all_feat, params["classifier2"])
    classifier_fin = mlp(jnp.concatenate((feature, classifier, c_all), axis=1),
                         params["classifierF"])

    segcoef = linear(c_all, *params["segcoef"], act="sigmoid")
    clascoef = linear(classifier, *params["clascoef"], act="sigmoid")
    fincoef = linear(classifier_fin, *params["fincoef"], act="sigmoid")

    return seg_map, classifier, classifier_fin, segcoef, clascoef, fincoef


# ----------------------------------------------------------------------------
# Deterministic parameter init (scaled-down channel counts)
# ----------------------------------------------------------------------------
def init_params(key):
    it = iter(jax.random.split(key, 64))

    def nrm(shape, s=0.1):
        return jax.random.normal(next(it), shape, jnp.float32) * s

    Cf, Ccf, Cp = 64, 32, 64                                  # stand-ins for 2048/1024/1024

    def up_params(cin, cout):
        return dict(w=nrm((cout, cin, 3, 3)), b=nrm((cout,)),
                    bn_gamma=jnp.ones((cout,), jnp.float32),
                    bn_beta=jnp.zeros((cout,), jnp.float32),
                    bn_mean=jnp.zeros((cout,), jnp.float32),
                    bn_var=jnp.ones((cout,), jnp.float32),
                    prelu_alpha=0.25)

    def att_params(c):
        c8 = max(c // 8, 1)
        return dict(wq=nrm((c8, c)), bq=nrm((c8,)),
                    wk=nrm((c8, c)), bk=nrm((c8,)),
                    wv=nrm((c, c)), bv=nrm((c,)),
                    gamma=jnp.float32(0.5))

    def lin(cin, cout):
        return (nrm((cout, cin)), nrm((cout,)))

    params = {
        "psp": dict(stage_ws=[nrm((Cf, Cf)) for _ in SIZES],
                    bottle_w=nrm((Cp, Cf * (len(SIZES) + 1))),
                    bottle_b=nrm((Cp,))),
        "up1": up_params(Cp, 32),
        "up2": up_params(32, 16),
        "up3": up_params(16, 16),
        "final": dict(w=nrm((3, 16)), b=nrm((3,))),
        "att1": att_params(Cf),
        "att2": att_params(Ccf),
        "classifier": [lin(Ccf, 16), lin(16, 8), lin(8, 4)],
        "classifier2": [lin(Ccf + Cf, 64), lin(64, 32), lin(32, 16), lin(16, 4)],
        "classifier3": [lin(2, 4)],
        "classifierF": [lin(12, 4)],
        "segcoef": lin(4, 1),
        "clascoef": lin(4, 1),
        "fincoef": lin(4, 1),
    }
    return params


if __name__ == "__main__":
    key = jax.random.PRNGKey(0)
    kf, kcf, kp = jax.random.split(key, 3)
    # Backbone outputs (small shapes): f = (N, 64, 8, 8), class_f = (N, 32, 8, 8)
    f = jax.random.normal(kf, (2, 64, 8, 8), jnp.float32)
    class_f = jax.random.normal(kcf, (2, 32, 8, 8), jnp.float32)
    params = init_params(kp)

    outs = pspnet_forward(f, class_f, params)
    outs = jax.block_until_ready(outs)

    seg_map, classifier, classifier_fin, segcoef, clascoef, fincoef = outs
    assert seg_map.shape == (2, 3, 64, 64)
    assert classifier.shape == (2, 4) and classifier_fin.shape == (2, 4)
    assert segcoef.shape == (2, 1) and clascoef.shape == (2, 1) and fincoef.shape == (2, 1)
    print("KERNEL_OK")
</pallas_src>

<mosaic_0001>
module attributes {stable_mosaic.version = 11 : i64} {
  func.func @_mm_kernel(%arg0: i32, %arg1: i32, %arg2: memref<128x320xbf16, #tpu.memory_space<vmem>>, %arg3: memref<320x64xbf16, #tpu.memory_space<vmem>>, %arg4: memref<1x64xf32, #tpu.memory_space<vmem>>, %arg5: memref<1x64xf32, #tpu.memory_space<vmem>>, %arg6: memref<128x64xf32, #tpu.memory_space<vmem>>) attributes {dimension_semantics = [#tpu.dimension_semantics<parallel>, #tpu.dimension_semantics<parallel>], iteration_bounds = array<i64: 1, 1>, scalar_prefetch = 0 : i64, scratch_operands = 0 : i64, tpu.core_type = #tpu.core_type<tc>, window_params = [{transform_indices = @transform_0, window_bounds = array<i64: 128, 320>}, {transform_indices = @transform_1, window_bounds = array<i64: 320, 64>}, {transform_indices = @transform_2, window_bounds = array<i64: 1, 64>}, {transform_indices = @transform_3, window_bounds = array<i64: 1, 64>}, {transform_indices = @transform_4, window_bounds = array<i64: 128, 64>}]} {
    %c0 = arith.constant 0 : index
    %c0_0 = arith.constant 0 : index
    %0 = vector.load %arg2[%c0, %c0_0] : memref<128x320xbf16, #tpu.memory_space<vmem>>, vector<128x320xbf16>
    %c0_1 = arith.constant 0 : index
    %c0_2 = arith.constant 0 : index
    %1 = vector.load %arg3[%c0_1, %c0_2] : memref<320x64xbf16, #tpu.memory_space<vmem>>, vector<320x64xbf16>
    %cst = arith.constant dense<0.000000e+00> : vector<128x64xf32>
    %2 = tpu.matmul %0, %1, %cst {dimension_numbers = #tpu.dot_dimension_numbers<[1], [0], [0], [1], [0, 0, 1, 1], [], []>} : vector<128x320xbf16>, vector<320x64xbf16>, vector<128x64xf32> -> vector<128x64xf32>
    %c0_3 = arith.constant 0 : index
    %c0_4 = arith.constant 0 : index
    %3 = vector.load %arg4[%c0_3, %c0_4] : memref<1x64xf32, #tpu.memory_space<vmem>>, vector<1x64xf32>
    %4 = vector.broadcast %3 : vector<1x64xf32> to vector<128x64xf32>
    %5 = arith.mulf %2, %4 : vector<128x64xf32>
    %c0_5 = arith.constant 0 : index
    %c0_6 = arith.constant 0 : index
    %6 = vector.load %arg5[%c0_5, %c0_6] : memref<1x64xf32, #tpu.memory_space<vmem>>, vector<1x64xf32>
    %7 = vector.broadcast %6 : vector<1x64xf32> to vector<128x64xf32>
    %8 = arith.addf %5, %7 : vector<128x64xf32>
    %cst_7 = arith.constant 0.000000e+00 : f32
    %9 = vector.broadcast %cst_7 : f32 to vector<128x64xf32>
    %10 = arith.maximumf %8, %9 : vector<128x64xf32>
    %c0_8 = arith.constant 0 : index
    %c0_9 = arith.constant 0 : index
    %11 = vector.load %arg6[%c0_8, %c0_9] : memref<128x64xf32, #tpu.memory_space<vmem>>, vector<128x64xf32>
    tpu.vector_store %arg6[%c0_8, %c0_9], %10 {strides = array<i32>} : memref<128x64xf32, #tpu.memory_space<vmem>>, vector<128x64xf32>,
    return
  }
  func.func @transform_0(%arg0: i32, %arg1: i32) -> (i32, i32) {
    %c0_i32 = arith.constant 0 : i32
    %c0_i32_0 = arith.constant 0 : i32
    return %arg0, %c0_i32 : i32, i32
  }
  func.func @transform_1(%arg0: i32, %arg1: i32) -> (i32, i32) {
    %c0_i32 = arith.constant 0 : i32
    %c0_i32_0 = arith.constant 0 : i32
    return %c0_i32, %arg1 : i32, i32
  }
  func.func @transform_2(%arg0: i32, %arg1: i32) -> (i32, i32) {
    %c0_i32 = arith.constant 0 : i32
    %c0_i32_0 = arith.constant 0 : i32
    return %c0_i32, %arg1 : i32, i32
  }
  func.func @transform_3(%arg0: i32, %arg1: i32) -> (i32, i32) {
    %c0_i32 = arith.constant 0 : i32
    %c0_i32_0 = arith.constant 0 : i32
    return %c0_i32, %arg1 : i32, i32
  }
  func.func @transform_4(%arg0: i32, %arg1: i32) -> (i32, i32) {
    %c0_i32 = arith.constant 0 : i32
    return %arg0, %arg1 : i32, i32
  }
}

</mosaic_0001>

<llo_original>
// kernel: tpu_custom_call.1
$region0: #{tpu_custom_call.1}
  #allocation0 [shape = 'u32[]', space=smem, size = 0x4, offset = 0x4, fixed_abs, tag = 'smem constant byte address 0x4 - core index']
  #allocation1 [shape = 'u32[144,128]{1,0:T(1,128)}', space=vmem, size = 0x12000, scoped, tag = 'internal scratch']
  %s0 = inlined_call_operand.vmem [shape: bf16[128,320], index: 0, kind: input, shape index: {}]
  %s1 = inlined_call_operand.vmem [shape: bf16[320,64], index: 1, kind: input, shape index: {}]
  %s2 = inlined_call_operand.vmem [shape: f32[1,64], index: 2, kind: input, shape index: {}]
  %s3 = inlined_call_operand.vmem [shape: f32[1,64], index: 3, kind: input, shape index: {}]
  %s4 = inlined_call_operand.vmem [shape: f32[128,64], index: 4, kind: output, shape index: {}]
  %s5 = sld [smem:[#allocation0]]
  $region26: #{tpu_custom_call.1} parent=0
    _
  %s7 = ssub.s32 1, %s5
  %s8 = scalar_select 0, %s7, %s5
  // Predicated region
  $region2: #{tpu_custom_call.1} parent=0 // pred_check
    _
  $region3: #{tpu_custom_call.1} parent=0 // pred_check_branch
    %10 = sbr.rel (0) target = $region5
  $region4: #{tpu_custom_call.1} parent=0 // pred_region
    _
  $region5: #{tpu_custom_call.1} parent=0 // pred_fallthru
    _
  // Predicated region
  $region6: #{tpu_custom_call.1} parent=0 // pred_check
    _
  $region7: #{tpu_custom_call.1} parent=0 // pred_check_branch
    %12 = sbr.rel (0) target = $region9
  $region8: #{tpu_custom_call.1} parent=0 // pred_region
    _
  $region9: #{tpu_custom_call.1} parent=0 // pred_fallthru
    _
  // Predicated region
  $region10: #{tpu_custom_call.1} parent=0 // pred_check
    _
  $region11: #{tpu_custom_call.1} parent=0 // pred_check_branch
    %14 = sbr.rel (0) target = $region13
  $region12: #{tpu_custom_call.1} parent=0 // pred_region
    _
  $region13: #{tpu_custom_call.1} parent=0 // pred_fallthru
    _
  // Predicated region
  $region14: #{tpu_custom_call.1} parent=0 // pred_check
    _
  $region15: #{tpu_custom_call.1} parent=0 // pred_check_branch
    %16 = sbr.rel (0) target = $region17
  $region16: #{tpu_custom_call.1} parent=0 // pred_region
    _
  $region17: #{tpu_custom_call.1} parent=0 // pred_fallthru
    _
  %v18 = vld [vmem:[%s0] sm:$0xff]
  %v19 = vld [vmem:[%s0 + $0x8] sm:$0xf]
  %v20 = vld [vmem:[%s0 + $0xc] sm:$0xff]
  %v21 = vld [vmem:[%s0 + $0x14] sm:$0xf]
  %v22 = vld [vmem:[%s0 + $0x18] sm:$0xff]
  %v23 = vld [vmem:[%s0 + $0x20] sm:$0xf]
  %v24 = vld [vmem:[%s0 + $0x24] sm:$0xff]
  %v25 = vld [vmem:[%s0 + $0x2c] sm:$0xf]
  %v26 = vld [vmem:[%s0 + $0x30] sm:$0xff]
  %v27 = vld [vmem:[%s0 + $0x38] sm:$0xf]
  %v28 = vld [vmem:[%s0 + $0x3c] sm:$0xff]
  %v29 = vld [vmem:[%s0 + $0x44] sm:$0xf]
  %v30 = vld [vmem:[%s0 + $0x48] sm:$0xff]
  %v31 = vld [vmem:[%s0 + $0x50] sm:$0xf]
  %v32 = vld [vmem:[%s0 + $0x54] sm:$0xff]
  %v33 = vld [vmem:[%s0 + $0x5c] sm:$0xf]
  %v34 = vld [vmem:[%s0 + $0x60] sm:$0xff]
  %v35 = vld [vmem:[%s0 + $0x68] sm:$0xf]
  %v36 = vld [vmem:[%s0 + $0x6c] sm:$0xff]
  %v37 = vld [vmem:[%s0 + $0x74] sm:$0xf]
  %v38 = vld [vmem:[%s0 + $0x78] sm:$0xff]
  %v39 = vld [vmem:[%s0 + $0x80] sm:$0xf]
  %v40 = vld [vmem:[%s0 + $0x84] sm:$0xff]
  %v41 = vld [vmem:[%s0 + $0x8c] sm:$0xf]
  %v42 = vld [vmem:[%s0 + $0x90] sm:$0xff]
  %v43 = vld [vmem:[%s0 + $0x98] sm:$0xf]
  %v44 = vld [vmem:[%s0 + $0x9c] sm:$0xff]
  %v45 = vld [vmem:[%s0 + $0xa4] sm:$0xf]
  %v46 = vld [vmem:[%s0 + $0xa8] sm:$0xff]
  %v47 = vld [vmem:[%s0 + $0xb0] sm:$0xf]
  %v48 = vld [vmem:[%s0 + $0xb4] sm:$0xff]
  %v49 = vld [vmem:[%s0 + $0xbc] sm:$0xf]
  %v50 = vld [vmem:[%s1] sm:$0xf]
  %v51 = vld [vmem:[%s1 + $0x4] sm:$0xf]
  %v52 = vld [vmem:[%s1 + $0x8] sm:$0xf]
  %v53 = vld [vmem:[%s1 + $0xc] sm:$0xf]
  %v54 = vld [vmem:[%s1 + $0x10] sm:$0xf]
  %v55 = vld [vmem:[%s1 + $0x14] sm:$0xf]
  %v56 = vld [vmem:[%s1 + $0x18] sm:$0xf]
  %v57 = vld [vmem:[%s1 + $0x1c] sm:$0xf]
  %v58 = vld [vmem:[%s1 + $0x20] sm:$0xf]
  %v59 = vld [vmem:[%s1 + $0x24] sm:$0xf]
  %v60 = vld [vmem:[%s1 + $0x28] sm:$0xf]
  %v61 = vld [vmem:[%s1 + $0x2c] sm:$0xf]
  %v62 = vld [vmem:[%s1 + $0x30] sm:$0xf]
  %v63 = vld [vmem:[%s1 + $0x34] sm:$0xf]
  %v64 = vld [vmem:[%s1 + $0x38] sm:$0xf]
  %v65 = vld [vmem:[%s1 + $0x3c] sm:$0xf]
  %v66 = vld [vmem:[%s1 + $0x40] sm:$0xf]
  %v67 = vld [vmem:[%s1 + $0x44] sm:$0xf]
  %v68 = vld [vmem:[%s1 + $0x48] sm:$0xf]
  %v69 = vld [vmem:[%s1 + $0x4c] sm:$0xf]
  %v70 = vld [vmem:[%s1 + $0x50] sm:$0xf]
  %v71 = vld [vmem:[%s1 + $0x54] sm:$0xf]
  %v72 = vld [vmem:[%s1 + $0x58] sm:$0xf]
  %v73 = vld [vmem:[%s1 + $0x5c] sm:$0xf]
  %v74 = vld [vmem:[%s1 + $0x60] sm:$0xf]
  %v75 = vld [vmem:[%s1 + $0x64] sm:$0xf]
  %v76 = vld [vmem:[%s1 + $0x68] sm:$0xf]
  %v77 = vld [vmem:[%s1 + $0x6c] sm:$0xf]
  %v78 = vld [vmem:[%s1 + $0x70] sm:$0xf]
  %v79 = vld [vmem:[%s1 + $0x74] sm:$0xf]
  %v80 = vld [vmem:[%s1 + $0x78] sm:$0xf]
  %v81 = vld [vmem:[%s1 + $0x7c] sm:$0xf]
  %v82 = vld [vmem:[%s1 + $0x80] sm:$0xf]
  %v83 = vld [vmem:[%s1 + $0x84] sm:$0xf]
  %v84 = vld [vmem:[%s1 + $0x88] sm:$0xf]
  %v85 = vld [vmem:[%s1 + $0x8c] sm:$0xf]
  %v86 = vld [vmem:[%s1 + $0x90] sm:$0xf]
  %v87 = vld [vmem:[%s1 + $0x94] sm:$0xf]
  %v88 = vld [vmem:[%s1 + $0x98] sm:$0xf]
  %v89 = vld [vmem:[%s1 + $0x9c] sm:$0xf]
  %v122 = vunpack.c.l.b16 %v18
  %v123 = vunpack.c.h.b16 %v18
  %v124 = vunpack.c.l.b16 %v19
  %v125 = vunpack.c.l.b16 %v20
  %v126 = vunpack.c.h.b16 %v20
  %v127 = vunpack.c.l.b16 %v21
  %v128 = vunpack.c.l.b16 %v22
  %v129 = vunpack.c.h.b16 %v22
  %v130 = vunpack.c.l.b16 %v23
  %v131 = vunpack.c.l.b16 %v24
  %v132 = vunpack.c.h.b16 %v24
  %v133 = vunpack.c.l.b16 %v25
  %v134 = vunpack.c.l.b16 %v26
  %v135 = vunpack.c.h.b16 %v26
  %v136 = vunpack.c.l.b16 %v27
  %v137 = vunpack.c.l.b16 %v28
  %v138 = vunpack.c.h.b16 %v28
  %v139 = vunpack.c.l.b16 %v29
  %v140 = vunpack.c.l.b16 %v30
  %v141 = vunpack.c.h.b16 %v30
  %v142 = vunpack.c.l.b16 %v31
  %v143 = vunpack.c.l.b16 %v32
  %v144 = vunpack.c.h.b16 %v32
  %v145 = vunpack.c.l.b16 %v33
  %v146 = vunpack.c.l.b16 %v34
  %v147 = vunpack.c.h.b16 %v34
  %v148 = vunpack.c.l.b16 %v35
  %v149 = vunpack.c.l.b16 %v36
  %v150 = vunpack.c.h.b16 %v36
  %v151 = vunpack.c.l.b16 %v37
  %v152 = vunpack.c.l.b16 %v38
  %v153 = vunpack.c.h.b16 %v38
  %v154 = vunpack.c.l.b16 %v39
  %v155 = vunpack.c.l.b16 %v40
  %v156 = vunpack.c.h.b16 %v40
  %v157 = vunpack.c.l.b16 %v41
  %v158 = vunpack.c.l.b16 %v42
  %v159 = vunpack.c.h.b16 %v42
  %v160 = vunpack.c.l.b16 %v43
  %v161 = vunpack.c.l.b16 %v44
  %v162 = vunpack.c.h.b16 %v44
  %v163 = vunpack.c.l.b16 %v45
  %v164 = vunpack.c.l.b16 %v46
  %v165 = vunpack.c.h.b16 %v46
  %v166 = vunpack.c.l.b16 %v47
  %v167 = vunpack.c.l.b16 %v48
  %v168 = vunpack.c.h.b16 %v48
  %v169 = vunpack.c.l.b16 %v49
  %v170 = vpack.c.b16 %v125, %v122
  %v171 = vpack.c.b16 %v126, %v123
  %v172 = vpack.c.b16 %v127, %v124
  %v173 = vpack.c.b16 %v131, %v128
  %v174 = vpack.c.b16 %v132, %v129
  %v175 = vpack.c.b16 %v133, %v130
  %v176 = vpack.c.b16 %v137, %v134
  %v177 = vpack.c.b16 %v138, %v135
  %v178 = vpack.c.b16 %v139, %v136
  %v179 = vpack.c.b16 %v143, %v140
  %v180 = vpack.c.b16 %v144, %v141
  %v181 = vpack.c.b16 %v145, %v142
  %v182 = vpack.c.b16 %v149, %v146
  %v183 = vpack.c.b16 %v150, %v147
  %v184 = vpack.c.b16 %v151, %v148
  %v185 = vpack.c.b16 %v155, %v152
  %v186 = vpack.c.b16 %v156, %v153
  %v187 = vpack.c.b16 %v157, %v154
  %v188 = vpack.c.b16 %v161, %v158
  %v189 = vpack.c.b16 %v162, %v159
  %v190 = vpack.c.b16 %v163, %v160
  %v191 = vpack.c.b16 %v167, %v164
  %v192 = vpack.c.b16 %v168, %v165
  %v193 = vpack.c.b16 %v169, %v166
  %v250 = vunpack.c.l.b16 %v50
  %v251 = vunpack.c.l.b16 %v51
  %v252 = vunpack.c.l.b16 %v52
  %v253 = vunpack.c.l.b16 %v53
  %v254 = vunpack.c.l.b16 %v54
  %v255 = vunpack.c.l.b16 %v55
  %v256 = vunpack.c.l.b16 %v56
  %v257 = vunpack.c.l.b16 %v57
  %v258 = vunpack.c.l.b16 %v58
  %v259 = vunpack.c.l.b16 %v59
  %v260 = vunpack.c.l.b16 %v60
  %v261 = vunpack.c.l.b16 %v61
  %v262 = vunpack.c.l.b16 %v62
  %v263 = vunpack.c.l.b16 %v63
  %v264 = vunpack.c.l.b16 %v64
  %v265 = vunpack.c.l.b16 %v65
  %v266 = vunpack.c.l.b16 %v66
  %v267 = vunpack.c.l.b16 %v67
  %v268 = vunpack.c.l.b16 %v68
  %v269 = vunpack.c.l.b16 %v69
  %v270 = vunpack.c.l.b16 %v70
  %v271 = vunpack.c.l.b16 %v71
  %v272 = vunpack.c.l.b16 %v72
  %v273 = vunpack.c.l.b16 %v73
  %v274 = vunpack.c.l.b16 %v74
  %v275 = vunpack.c.l.b16 %v75
  %v276 = vunpack.c.l.b16 %v76
  %v277 = vunpack.c.l.b16 %v77
  %v278 = vunpack.c.l.b16 %v78
  %v279 = vunpack.c.l.b16 %v79
  %v280 = vunpack.c.l.b16 %v80
  %v281 = vunpack.c.l.b16 %v81
  %v282 = vunpack.c.l.b16 %v82
  %v283 = vunpack.c.l.b16 %v83
  %v284 = vunpack.c.l.b16 %v84
  %v285 = vunpack.c.l.b16 %v85
  %v286 = vunpack.c.l.b16 %v86
  %v287 = vunpack.c.l.b16 %v87
  %v288 = vunpack.c.l.b16 %v88
  %v289 = vunpack.c.l.b16 %v89
  %v290 = vpack.c.b16 %v251, %v250
  %v291 = vpack.c.b16 %v253, %v252
  %v292 = vpack.c.b16 %v255, %v254
  %v293 = vpack.c.b16 %v257, %v256
  %v294 = vpack.c.b16 %v259, %v258
  %v295 = vpack.c.b16 %v261, %v260
  %v296 = vpack.c.b16 %v263, %v262
  %v297 = vpack.c.b16 %v265, %v264
  %v298 = vpack.c.b16 %v267, %v266
  %v299 = vpack.c.b16 %v269, %v268
  %v300 = vpack.c.b16 %v271, %v270
  %v301 = vpack.c.b16 %v273, %v272
  %v302 = vpack.c.b16 %v275, %v274
  %v303 = vpack.c.b16 %v277, %v276
  %v304 = vpack.c.b16 %v279, %v278
  %v305 = vpack.c.b16 %v281, %v280
  %v306 = vpack.c.b16 %v283, %v282
  %v307 = vpack.c.b16 %v285, %v284
  %v308 = vpack.c.b16 %v287, %v286
  %v309 = vpack.c.b16 %v289, %v288
  %vm330 = vcmask 523264
  %v332 = vsel %vm330, %v172, 0
  %v335 = vsel %vm330, %v175, 0
  %v338 = vsel %vm330, %v178, 0
  %v341 = vsel %vm330, %v181, 0
  %v344 = vsel %vm330, %v184, 0
  %v347 = vsel %vm330, %v187, 0
  %v350 = vsel %vm330, %v190, 0
  %v353 = vsel %vm330, %v193, 0
  %355 = vmatprep.subr.bf16.mxu0 0
  %356 = vmatpush1.bf16.msra.mxu0 %v297
  %357 = vmatprep.subr.bf16.mxu0 0
  %358 = vmatpush1.bf16.msra.mxu0 %v296
  %359 = vmatprep.subr.bf16.mxu0 0
  %360 = vmatpush1.bf16.msra.mxu0 %v295
  %361 = vmatprep.subr.bf16.mxu0 0
  %362 = vmatpush1.bf16.msra.mxu0 %v294
  %363 = vmatprep.subr.bf16.mxu0 0
  %364 = vmatpush1.bf16.msra.mxu0 %v293
  %365 = vmatprep.subr.bf16.mxu0 0
  %366 = vmatpush1.bf16.msra.mxu0 %v292
  %367 = vmatprep.subr.bf16.mxu0 0
  %368 = vmatpush1.bf16.msra.mxu0 %v291
  %369 = vmatprep.subr.bf16.mxu0 0
  %370 = vmatpush1.bf16.msra.mxu0 %v290
  %371 = vmatprep.subr.bf16.mxu0 0
  %372 = vmatpush2.bf16.msra.mxu0 %v305
  %373 = vmatprep.subr.bf16.mxu0 0
  %374 = vmatpush2.bf16.msra.mxu0 %v304
  %375 = vmatprep.subr.bf16.mxu0 0
  %376 = vmatpush2.bf16.msra.mxu0 %v303
  %377 = vmatprep.subr.bf16.mxu0 0
  %378 = vmatpush2.bf16.msra.mxu0 %v302
  %379 = vmatprep.subr.bf16.mxu0 0
  %380 = vmatpush2.bf16.msra.mxu0 %v301
  %381 = vmatprep.subr.bf16.mxu0 0
  %382 = vmatpush2.bf16.msra.mxu0 %v300
  %383 = vmatprep.subr.bf16.mxu0 0
  %384 = vmatpush2.bf16.msra.mxu0 %v299
  %385 = vmatprep.subr.bf16.mxu0 0
  %386 = vmatpush2.bf16.msra.mxu0 %v298
  %387 = vmatprep.mubr.bf16.mxu0 %v171
  %388 = vmatmul.mubr.bf16.gmra.mxu0 %v170
  %v389 = vpop.f32.mrf.mxu0
  %v390 = vadd.f32 0.0, %v389
  %v391 = vpop.f32.mrf.mxu0
  %v392 = vpop.f32.mrf.mxu0
  %v393 = vadd.f32 0.0, %v392
  %v394 = vpop.f32.mrf.mxu0
  %395 = vmatprep.mubr.bf16.mxu0 %v174
  %396 = vmatmul.mubr.bf16.gmra.mxu0 %v173
  %v397 = vpop.f32.mrf.mxu0
  %v398 = vadd.f32 0.0, %v397
  %v399 = vpop.f32.mrf.mxu0
  %v400 = vpop.f32.mrf.mxu0
  %v401 = vadd.f32 0.0, %v400
  %v402 = vpop.f32.mrf.mxu0
  %403 = vmatprep.mubr.bf16.mxu0 %v177
  %404 = vmatmul.mubr.bf16.gmra.mxu0 %v176
  %v405 = vpop.f32.mrf.mxu0
  %v406 = vadd.f32 0.0, %v405
  %v407 = vpop.f32.mrf.mxu0
  %v408 = vpop.f32.mrf.mxu0
  %v409 = vadd.f32 0.0, %v408
  %v410 = vpop.f32.mrf.mxu0
  %411 = vmatprep.mubr.bf16.mxu0 %v180
  %412 = vmatmul.mubr.bf16.gmra.mxu0 %v179
  %v413 = vpop.f32.mrf.mxu0
  %v414 = vadd.f32 0.0, %v413
  %v415 = vpop.f32.mrf.mxu0
  %v416 = vpop.f32.mrf.mxu0
  %v417 = vadd.f32 0.0, %v416
  %v418 = vpop.f32.mrf.mxu0
  %419 = vmatprep.mubr.bf16.mxu0 %v183
  %420 = vmatmul.mubr.bf16.gmra.mxu0 %v182
  %v421 = vpop.f32.mrf.mxu0
  %v422 = vadd.f32 0.0, %v421
  %v423 = vpop.f32.mrf.mxu0
  %v424 = vpop.f32.mrf.mxu0
  %v425 = vadd.f32 0.0, %v424
  %v426 = vpop.f32.mrf.mxu0
  %427 = vmatprep.mubr.bf16.mxu0 %v186
  %428 = vmatmul.mubr.bf16.gmra.mxu0 %v185
  %v429 = vpop.f32.mrf.mxu0
  %v430 = vadd.f32 0.0, %v429
  %v431 = vpop.f32.mrf.mxu0
  %v432 = vpop.f32.mrf.mxu0
  %v433 = vadd.f32 0.0, %v432
  %v434 = vpop.f32.mrf.mxu0
  %435 = vmatprep.mubr.bf16.mxu0 %v189
  %436 = vmatmul.mubr.bf16.gmra.mxu0 %v188
  %v437 = vpop.f32.mrf.mxu0
  %v438 = vadd.f32 0.0, %v437
  %v439 = vpop.f32.mrf.mxu0
  %v440 = vpop.f32.mrf.mxu0
  %v441 = vadd.f32 0.0, %v440
  %v442 = vpop.f32.mrf.mxu0
  %443 = vmatprep.mubr.bf16.mxu0 %v192
  %444 = vmatmul.mubr.bf16.gmra.mxu0 %v191
  %v445 = vpop.f32.mrf.mxu0
  %v446 = vadd.f32 0.0, %v445
  %v447 = vpop.f32.mrf.mxu0
  %v448 = vpop.f32.mrf.mxu0
  %v449 = vadd.f32 0.0, %v448
  %v450 = vpop.f32.mrf.mxu0
  %451 = vdwg.mxu0
  %452 = vmatprep.subr.bf16.mxu0 0
  %453 = vmatpush1.bf16.msra.mxu0 0
  %454 = vmatprep.subr.bf16.mxu0 0
  %455 = vmatpush1.bf16.msra.mxu0 0
  %456 = vmatprep.subr.bf16.mxu0 0
  %457 = vmatpush1.bf16.msra.mxu0 0
  %458 = vmatprep.subr.bf16.mxu0 0
  %459 = vmatpush1.bf16.msra.mxu0 0
  %460 = vmatprep.subr.bf16.mxu0 0
  %461 = vmatpush1.bf16.msra.mxu0 %v309
  %462 = vmatprep.subr.bf16.mxu0 0
  %463 = vmatpush1.bf16.msra.mxu0 %v308
  %464 = vmatprep.subr.bf16.mxu0 0
  %465 = vmatpush1.bf16.msra.mxu0 %v307
  %466 = vmatprep.subr.bf16.mxu0 0
  %467 = vmatpush1.bf16.msra.mxu0 %v306
  %468 = vmatprep.subr.bf16.mxu0 0
  %469 = vmatpush2.bf16.msra.mxu0 0
  %470 = vmatprep.subr.bf16.mxu0 0
  %471 = vmatpush2.bf16.msra.mxu0 0
  %472 = vmatprep.subr.bf16.mxu0 0
  %473 = vmatpush2.bf16.msra.mxu0 0
  %474 = vmatprep.subr.bf16.mxu0 0
  %475 = vmatpush2.bf16.msra.mxu0 0
  %476 = vmatprep.subr.bf16.mxu0 0
  %477 = vmatpush2.bf16.msra.mxu0 0
  %478 = vmatprep.subr.bf16.mxu0 0
  %479 = vmatpush2.bf16.msra.mxu0 0
  %480 = vmatprep.subr.bf16.mxu0 0
  %481 = vmatpush2.bf16.msra.mxu0 0
  %482 = vmatprep.subr.bf16.mxu0 0
  %483 = vmatpush2.bf16.msra.mxu0 0
  %484 = vmatprep.mubr.bf16.mxu0 0
  %485 = vmatmul.mubr.bf16.gmra.mxu0 %v332
  %v486 = vpop.f32.mrf.mxu0
  %v487 = vadd.f32 %v390, %v486
  %v488 = vpop.f32.mrf.mxu0
  %v489 = vpop.f32.mrf.mxu0
  %v490 = vadd.f32 %v393, %v489
  %v491 = vpop.f32.mrf.mxu0
  %492 = vmatprep.mubr.bf16.mxu0 0
  %493 = vmatmul.mubr.bf16.gmra.mxu0 %v335
  %v494 = vpop.f32.mrf.mxu0
  %v495 = vadd.f32 %v398, %v494
  %v496 = vpop.f32.mrf.mxu0
  %v497 = vpop.f32.mrf.mxu0
  %v498 = vadd.f32 %v401, %v497
  %v499 = vpop.f32.mrf.mxu0
  %500 = vmatprep.mubr.bf16.mxu0 0
  %501 = vmatmul.mubr.bf16.gmra.mxu0 %v338
  %v502 = vpop.f32.mrf.mxu0
  %v503 = vadd.f32 %v406, %v502
  %v504 = vpop.f32.mrf.mxu0
  %v505 = vpop.f32.mrf.mxu0
  %v506 = vadd.f32 %v409, %v505
  %v507 = vpop.f32.mrf.mxu0
  %508 = vmatprep.mubr.bf16.mxu0 0
  %509 = vmatmul.mubr.bf16.gmra.mxu0 %v341
  %v510 = vpop.f32.mrf.mxu0
  %v511 = vadd.f32 %v414, %v510
  %v512 = vpop.f32.mrf.mxu0
  %v513 = vpop.f32.mrf.mxu0
  %v514 = vadd.f32 %v417, %v513
  %v515 = vpop.f32.mrf.mxu0
  %516 = vmatprep.mubr.bf16.mxu0 0
  %517 = vmatmul.mubr.bf16.gmra.mxu0 %v344
  %v518 = vpop.f32.mrf.mxu0
  %v519 = vadd.f32 %v422, %v518
  %v520 = vpop.f32.mrf.mxu0
  %v521 = vpop.f32.mrf.mxu0
  %v522 = vadd.f32 %v425, %v521
  %v523 = vpop.f32.mrf.mxu0
  %524 = vmatprep.mubr.bf16.mxu0 0
  %525 = vmatmul.mubr.bf16.gmra.mxu0 %v347
  %v526 = vpop.f32.mrf.mxu0
  %v527 = vadd.f32 %v430, %v526
  %v528 = vpop.f32.mrf.mxu0
  %v529 = vpop.f32.mrf.mxu0
  %v530 = vadd.f32 %v433, %v529
  %v531 = vpop.f32.mrf.mxu0
  %532 = vmatprep.mubr.bf16.mxu0 0
  %533 = vmatmul.mubr.bf16.gmra.mxu0 %v350
  %v534 = vpop.f32.mrf.mxu0
  %v535 = vadd.f32 %v438, %v534
  %v536 = vpop.f32.mrf.mxu0
  %v537 = vpop.f32.mrf.mxu0
  %v538 = vadd.f32 %v441, %v537
  %v539 = vpop.f32.mrf.mxu0
  %540 = vmatprep.mubr.bf16.mxu0 0
  %541 = vmatmul.mubr.bf16.gmra.mxu0 %v353
  %v542 = vpop.f32.mrf.mxu0
  %v543 = vadd.f32 %v446, %v542
  %v544 = vpop.f32.mrf.mxu0
  %v545 = vpop.f32.mrf.mxu0
  %v546 = vadd.f32 %v449, %v545
  %v547 = vpop.f32.mrf.mxu0
  %548 = vdwg.mxu0
  %v549 = vld [vmem:[%s2] sm:$0x1]
  %v551 = vlaneseq
  %v552 = vshrl.u32 %v551, 7
  %v553 = vsub.s32 0, %v552
  %v554 = vrot.slane %v549, %v553
  %v556 = vmul.f32 %v487, %v554
  %v557 = vmul.f32 %v490, %v554
  %v558 = vmul.f32 %v495, %v554
  %v559 = vmul.f32 %v498, %v554
  %v560 = vmul.f32 %v503, %v554
  %v561 = vmul.f32 %v506, %v554
  %v562 = vmul.f32 %v511, %v554
  %v563 = vmul.f32 %v514, %v554
  %v564 = vmul.f32 %v519, %v554
  %v565 = vmul.f32 %v522, %v554
  %v566 = vmul.f32 %v527, %v554
  %v567 = vmul.f32 %v530, %v554
  %v568 = vmul.f32 %v535, %v554
  %v569 = vmul.f32 %v538, %v554
  %v570 = vmul.f32 %v543, %v554
  %v571 = vmul.f32 %v546, %v554
  %v572 = vld [vmem:[%s3] sm:$0x1]
  %v574 = vlaneseq
  %v575 = vshrl.u32 %v574, 7
  %v576 = vsub.s32 0, %v575
  %v577 = vrot.slane %v572, %v576
  %v579 = vadd.f32 %v556, %v577
  %v580 = vadd.f32 %v557, %v577
  %v581 = vadd.f32 %v558, %v577
  %v582 = vadd.f32 %v559, %v577
  %v583 = vadd.f32 %v560, %v577
  %v584 = vadd.f32 %v561, %v577
  %v585 = vadd.f32 %v562, %v577
  %v586 = vadd.f32 %v563, %v577
  %v587 = vadd.f32 %v564, %v577
  %v588 = vadd.f32 %v565, %v577
  %v589 = vadd.f32 %v566, %v577
  %v590 = vadd.f32 %v567, %v577
  %v591 = vadd.f32 %v568, %v577
  %v592 = vadd.f32 %v569, %v577
  %v593 = vadd.f32 %v570, %v577
  %v594 = vadd.f32 %v571, %v577
  %v595 = vmax.f32 %v579, 0.0
  %v596 = vmax.f32 %v580, 0.0
  %v597 = vmax.f32 %v581, 0.0
  %v598 = vmax.f32 %v582, 0.0
  %v599 = vmax.f32 %v583, 0.0
  %v600 = vmax.f32 %v584, 0.0
  %v601 = vmax.f32 %v585, 0.0
  %v602 = vmax.f32 %v586, 0.0
  %v603 = vmax.f32 %v587, 0.0
  %v604 = vmax.f32 %v588, 0.0
  %v605 = vmax.f32 %v589, 0.0
  %v606 = vmax.f32 %v590, 0.0
  %v607 = vmax.f32 %v591, 0.0
  %v608 = vmax.f32 %v592, 0.0
  %v609 = vmax.f32 %v593, 0.0
  %v610 = vmax.f32 %v594, 0.0
  %611 = vst.msk [vmem:[%s4] sm:$0xff] %vm330, %v595
  %612 = vst.msk [vmem:[%s4 + $0x8] sm:$0xff] %vm330, %v596
  %613 = vst.msk [vmem:[%s4 + $0x10] sm:$0xff] %vm330, %v597
  %614 = vst.msk [vmem:[%s4 + $0x18] sm:$0xff] %vm330, %v598
  %615 = vst.msk [vmem:[%s4 + $0x20] sm:$0xff] %vm330, %v599
  %616 = vst.msk [vmem:[%s4 + $0x28] sm:$0xff] %vm330, %v600
  %617 = vst.msk [vmem:[%s4 + $0x30] sm:$0xff] %vm330, %v601
  %618 = vst.msk [vmem:[%s4 + $0x38] sm:$0xff] %vm330, %v602
  %619 = vst.msk [vmem:[%s4 + $0x40] sm:$0xff] %vm330, %v603
  %620 = vst.msk [vmem:[%s4 + $0x48] sm:$0xff] %vm330, %v604
  %621 = vst.msk [vmem:[%s4 + $0x50] sm:$0xff] %vm330, %v605
  %622 = vst.msk [vmem:[%s4 + $0x58] sm:$0xff] %vm330, %v606
  %623 = vst.msk [vmem:[%s4 + $0x60] sm:$0xff] %vm330, %v607
  %624 = vst.msk [vmem:[%s4 + $0x68] sm:$0xff] %vm330, %v608
  %625 = vst.msk [vmem:[%s4 + $0x70] sm:$0xff] %vm330, %v609
  %626 = vst.msk [vmem:[%s4 + $0x78] sm:$0xff] %vm330, %v610
  // Predicated region
  $region18: #{tpu_custom_call.1} parent=0 // pred_check
    _
  $region19: #{tpu_custom_call.1} parent=0 // pred_check_branch
    %628 = sbr.rel (0) target = $region21
  $region20: #{tpu_custom_call.1} parent=0 // pred_region
    _
  $region21: #{tpu_custom_call.1} parent=0 // pred_fallthru
    _
  // Predicated region
  $region22: #{tpu_custom_call.1} parent=0 // pred_check
    _
  $region23: #{tpu_custom_call.1} parent=0 // pred_check_branch
    %630 = sbr.rel (0) target = $region25
  $region24: #{tpu_custom_call.1} parent=0 // pred_region
    _
  $region25: #{tpu_custom_call.1} parent=0 // pred_fallthru
    _

</llo_original>
